<compile_context>
chip_gen: v7x
topology: tpu7x:2x2x1
jax: 0.10.0
libtpu: 0.0.40
codegen_flags: <defaults>
</compile_context>

<pallas_src>
import jax
import jax.numpy as jnp
from jax.experimental import pallas as pl
from jax.experimental.pallas import tpu as pltpu

EMBED_DIM = 128
HIDDEN = 64
OUT_DIM = 10
H_PAD = 128     # hidden padded to lane width
OUT_PAD = 128   # output padded to lane width (lane-dense, unmasked stores)


def _round_up(x, m):
    return ((x + m - 1) // m) * m


def text_encoder_kernel(tok_ref, emb_ref, w1_ref, b1_ref, w2_ref, b2_ref, out_ref):
    # tok_ref: [TB, T] int32          emb_ref: [V_pad, E]     bf16
    # w1_ref:  [E, H_PAD] bf16        b1_ref:  [1, H_PAD]     f32
    # w2_ref:  [H_PAD, OUT_PAD] bf16  b2_ref:  [1, OUT_PAD]   f32
    # out_ref: [TB, OUT_PAD] f32
    tok = tok_ref[...]
    TB, T = tok.shape
    V_pad = emb_ref.shape[0]

    # Pooled one-hot counts built in VMEM: counts[b, v] = #{t : tok[b, t] == v}.
    vocab_ids = jax.lax.broadcasted_iota(jnp.int32, (TB, V_pad), 1)
    if T <= 8:
        # tiny, static T: fully unrolled VPU compares
        counts = jnp.zeros((TB, V_pad), jnp.float32)
        for t in range(T):
            counts = counts + (vocab_ids == tok[:, t:t + 1]).astype(jnp.float32)
    else:
        # non-trivial T: visible loop bounds vreg live ranges, bounded unroll keeps
        # LLO scheduling visibility
        def body(t, acc):
            col = jax.lax.dynamic_slice_in_dim(tok, t, 1, axis=1)
            return acc + (vocab_ids == col).astype(jnp.float32)
        counts = jax.lax.fori_loop(0, T, body,
                                   jnp.zeros((TB, V_pad), jnp.float32), unroll=4)

    # embedding lookup + sum over seq  ==  counts @ emb   (bf16 MXU, f32 accumulate).
    # Counts are small integers -> exact in bf16; the 1/T mean scale is applied
    # afterwards on the much narrower [TB, E] result, in f32.
    x = jnp.dot(counts.astype(jnp.bfloat16), emb_ref[...],
                preferred_element_type=jnp.float32)          # [TB, E]
    x = x * (1.0 / T)

    # Dense layers: bf16 operands at the matmul boundary only, f32 everywhere else.
    h = jnp.dot(x.astype(jnp.bfloat16), w1_ref[...],
                preferred_element_type=jnp.float32) + b1_ref[...]
    h = jnp.maximum(h, 0.0)                                  # ReLU (padded cols stay 0)
    y = jnp.dot(h.astype(jnp.bfloat16), w2_ref[...],
                preferred_element_type=jnp.float32) + b2_ref[...]

    # F.normalize(y, dim=-1): y / max(||y||, 1e-12) == y * rsqrt(max(sum(y^2), 1e-24)).
    # Padded output lanes are exactly 0, so they don't perturb the norm.
    sumsq = jnp.sum(y * y, axis=-1, keepdims=True)
    out_ref[...] = y * jax.lax.rsqrt(jnp.maximum(sumsq, 1e-24))


def init_params(key, vocab_size):
    k_emb, k_w1, k_b1, k_w2, k_b2 = jax.random.split(key, 5)
    emb = jax.random.normal(k_emb, (vocab_size, EMBED_DIM), jnp.float32)   # nn.Embedding ~ N(0,1)
    lim1 = 1.0 / jnp.sqrt(EMBED_DIM)
    w1 = jax.random.uniform(k_w1, (EMBED_DIM, HIDDEN), jnp.float32, -lim1, lim1)
    b1 = jax.random.uniform(k_b1, (1, HIDDEN), jnp.float32, -lim1, lim1)
    lim2 = 1.0 / jnp.sqrt(HIDDEN)
    w2 = jax.random.uniform(k_w2, (HIDDEN, OUT_DIM), jnp.float32, -lim2, lim2)
    b2 = jax.random.uniform(k_b2, (1, OUT_DIM), jnp.float32, -lim2, lim2)
    return emb, w1, b1, w2, b2


def prepare_params(params):
    """One-time layout plumbing: pad to lane/sublane-friendly shapes, cast matmul
    weights to bf16.  Call once at init; the per-call forward only pads tokens."""
    emb, w1, b1, w2, b2 = params
    V, E = emb.shape
    assert E == EMBED_DIM
    V_pad = _round_up(V, 128)
    emb_p = jnp.zeros((V_pad, E), jnp.bfloat16).at[:V].set(emb.astype(jnp.bfloat16))
    w1_p = jnp.zeros((E, H_PAD), jnp.bfloat16).at[:, :HIDDEN].set(w1.astype(jnp.bfloat16))
    b1_p = jnp.zeros((1, H_PAD), jnp.float32).at[:, :HIDDEN].set(b1)
    w2_p = jnp.zeros((H_PAD, OUT_PAD), jnp.bfloat16).at[:HIDDEN, :OUT_DIM].set(w2.astype(jnp.bfloat16))
    b2_p = jnp.zeros((1, OUT_PAD), jnp.float32).at[:, :OUT_DIM].set(b2)
    return emb_p, w1_p, b1_p, w2_p, b2_p


def text_encoder_forward(tokens, prepared, *, tile_b=None):
    emb_p, w1_p, b1_p, w2_p, b2_p = prepared
    B, T = tokens.shape
    V_pad, E = emb_p.shape

    if tile_b is None:
        tile_b = min(2048, _round_up(B, 8))           # large tile: step overhead ~0.35us
        if B > 256 and pl.cdiv(B, tile_b) < 2:        # keep >=2 grid steps so both v7x
            tile_b = _round_up(pl.cdiv(B, 2), 8)      # TensorCores get work
    num_tiles = pl.cdiv(B, tile_b)
    B_pad = num_tiles * tile_b

    # Only the (cheap) token padding happens per call.
    tok_p = jnp.zeros((B_pad, T), jnp.int32).at[:B].set(tokens.astype(jnp.int32))

    # Explicit scoped-VMEM budget (resident operands single-buffered, tiles double-buffered).
    vmem_bytes = (
        V_pad * E * 2                          # emb bf16 (Buffered(1))
        + E * H_PAD * 2 + H_PAD * 4            # w1 bf16 + b1 f32
        + H_PAD * OUT_PAD * 2 + OUT_PAD * 4    # w2 bf16 + b2 f32
        + 2 * tile_b * T * 4                   # token tile, double-buffered
        + 2 * tile_b * OUT_PAD * 4             # output tile, double-buffered
        + tile_b * V_pad * 4                   # pooled counts
        + tile_b * (E + H_PAD + OUT_PAD) * 4   # activations
    )
    vmem_limit = int(min(max(2 * vmem_bytes, 32 * 1024 * 1024), 64 * 1024 * 1024))

    resident = dict(pipeline_mode=pl.Buffered(1))     # constant-index operands: 1 buffer

    out = pl.pallas_call(
        text_encoder_kernel,
        out_shape=jax.ShapeDtypeStruct((B_pad, OUT_PAD), jnp.float32),
        grid=(num_tiles,),
        in_specs=[
            pl.BlockSpec((tile_b, T), lambda i: (i, 0)),                     # tokens: tiled over batch
            pl.BlockSpec((V_pad, E), lambda i: (0, 0), **resident),          # embedding: resident
            pl.BlockSpec((E, H_PAD), lambda i: (0, 0), **resident),          # w1
            pl.BlockSpec((1, H_PAD), lambda i: (0, 0), **resident),          # b1
            pl.BlockSpec((H_PAD, OUT_PAD), lambda i: (0, 0), **resident),    # w2
            pl.BlockSpec((1, OUT_PAD), lambda i: (0, 0), **resident),        # b2
        ],
        out_specs=pl.BlockSpec((tile_b, OUT_PAD), lambda i: (i, 0)),
        compiler_params=pltpu.CompilerParams(
            dimension_semantics=("parallel",),
            vmem_limit_bytes=vmem_limit,
        ),
    )(tok_p, emb_p, w1_p, b1_p, w2_p, b2_p)
    return out[:B, :OUT_DIM]


def text_encoder_reference(tokens, params):
    # Pure-JAX reference of the PyTorch module, mimicking the kernel's mixed
    # precision (bf16 matmul operands, f32 accumulation / elementwise math).
    emb, w1, b1, w2, b2 = params
    bf = lambda a: a.astype(jnp.bfloat16).astype(jnp.float32)
    T = tokens.shape[1]
    x = jnp.sum(bf(emb)[tokens], axis=1) * (1.0 / T)     # [B, E]
    h = jnp.maximum(bf(x) @ bf(w1) + b1, 0.0)
    y = bf(h) @ bf(w2) + b2
    n = jnp.sqrt(jnp.sum(y * y, axis=-1, keepdims=True))
    return y / jnp.maximum(n, 1e-12)


if __name__ == "__main__":
    # vocab from the characters of 'four' and 'nine' (as in the original script)
    chars = sorted(list(set("four" + "nine")))           # ['e','f','i','n','o','r','u']
    vocab_size = len(chars)                              # 7
    char_to_id = {c: i for i, c in enumerate(chars)}

    words = ["four", "nine"]                             # batch=2, seq=4
    tokens = jnp.array([[char_to_id[c] for c in w] for w in words], dtype=jnp.int32)

    params = init_params(jax.random.PRNGKey(0), vocab_size)
    prepared = jax.block_until_ready(prepare_params(params))   # one-time padding/casting

    apply_fn = jax.jit(text_encoder_forward)
    out = jax.block_until_ready(apply_fn(tokens, prepared))
    ref = text_encoder_reference(tokens, params)

    assert out.shape == (2, OUT_DIM)
    assert jnp.allclose(out, ref, atol=2e-3, rtol=2e-3), "mismatch vs reference"
    # outputs are L2-normalized
    assert jnp.allclose(jnp.linalg.norm(out, axis=-1), 1.0, atol=1e-3)

    print("KERNEL_OK")
</pallas_src>

<mosaic_0001>
module attributes {stable_mosaic.version = 11 : i64} {
  func.func @text_encoder_kernel(%arg0: i32, %arg1: memref<8x4xi32, #tpu.memory_space<vmem>>, %arg2: memref<128x128xbf16, #tpu.memory_space<vmem>>, %arg3: memref<128x128xbf16, #tpu.memory_space<vmem>>, %arg4: memref<1x128xf32, #tpu.memory_space<vmem>>, %arg5: memref<128x128xbf16, #tpu.memory_space<vmem>>, %arg6: memref<1x128xf32, #tpu.memory_space<vmem>>, %arg7: memref<8x128xf32, #tpu.memory_space<vmem>>) attributes {dimension_semantics = [#tpu.dimension_semantics<parallel>], iteration_bounds = array<i64: 1>, scalar_prefetch = 0 : i64, scratch_operands = 0 : i64, tpu.core_type = #tpu.core_type<tc>, window_params = [{transform_indices = @transform_0, window_bounds = array<i64: 8, 4>}, {pipeline_mode = #tpu.pipeline_mode<synchronous>, transform_indices = @transform_1, window_bounds = array<i64: 128, 128>}, {pipeline_mode = #tpu.pipeline_mode<synchronous>, transform_indices = @transform_2, window_bounds = array<i64: 128, 128>}, {pipeline_mode = #tpu.pipeline_mode<synchronous>, transform_indices = @transform_3, window_bounds = array<i64: 1, 128>}, {pipeline_mode = #tpu.pipeline_mode<synchronous>, transform_indices = @transform_4, window_bounds = array<i64: 128, 128>}, {pipeline_mode = #tpu.pipeline_mode<synchronous>, transform_indices = @transform_5, window_bounds = array<i64: 1, 128>}, {transform_indices = @transform_6, window_bounds = array<i64: 8, 128>}]} {
    %c0 = arith.constant 0 : index
    %c0_0 = arith.constant 0 : index
    %0 = vector.load %arg1[%c0, %c0_0] : memref<8x4xi32, #tpu.memory_space<vmem>>, vector<8x4xi32>
    %1 = tpu.iota {dimensions = array<i32: 1>} : vector<8x128xi32>
    %cst = arith.constant 0.000000e+00 : f32
    %2 = vector.broadcast %cst : f32 to vector<8x128xf32>
    %3 = vector.extract_strided_slice %0 {offsets = [0, 0], sizes = [8, 1], strides = [1, 1]} : vector<8x4xi32> to vector<8x1xi32>
    %4 = vector.broadcast %3 : vector<8x1xi32> to vector<8x128xi32>
    %5 = arith.cmpi eq, %1, %4 : vector<8x128xi32>
    %6 = arith.extui %5 : vector<8x128xi1> to vector<8x128xi32>
    %7 = arith.sitofp %6 : vector<8x128xi32> to vector<8x128xf32>
    %8 = arith.addf %2, %7 : vector<8x128xf32>
    %9 = vector.extract_strided_slice %0 {offsets = [0, 1], sizes = [8, 1], strides = [1, 1]} : vector<8x4xi32> to vector<8x1xi32>
    %10 = vector.broadcast %9 : vector<8x1xi32> to vector<8x128xi32>
    %11 = arith.cmpi eq, %1, %10 : vector<8x128xi32>
    %12 = arith.extui %11 : vector<8x128xi1> to vector<8x128xi32>
    %13 = arith.sitofp %12 : vector<8x128xi32> to vector<8x128xf32>
    %14 = arith.addf %8, %13 : vector<8x128xf32>
    %15 = vector.extract_strided_slice %0 {offsets = [0, 2], sizes = [8, 1], strides = [1, 1]} : vector<8x4xi32> to vector<8x1xi32>
    %16 = vector.broadcast %15 : vector<8x1xi32> to vector<8x128xi32>
    %17 = arith.cmpi eq, %1, %16 : vector<8x128xi32>
    %18 = arith.extui %17 : vector<8x128xi1> to vector<8x128xi32>
    %19 = arith.sitofp %18 : vector<8x128xi32> to vector<8x128xf32>
    %20 = arith.addf %14, %19 : vector<8x128xf32>
    %21 = vector.extract_strided_slice %0 {offsets = [0, 3], sizes = [8, 1], strides = [1, 1]} : vector<8x4xi32> to vector<8x1xi32>
    %22 = vector.broadcast %21 : vector<8x1xi32> to vector<8x128xi32>
    %23 = arith.cmpi eq, %1, %22 : vector<8x128xi32>
    %24 = arith.extui %23 : vector<8x128xi1> to vector<8x128xi32>
    %25 = arith.sitofp %24 : vector<8x128xi32> to vector<8x128xf32>
    %26 = arith.addf %20, %25 : vector<8x128xf32>
    %27 = arith.truncf %26 : vector<8x128xf32> to vector<8x128xbf16>
    %c0_1 = arith.constant 0 : index
    %c0_2 = arith.constant 0 : index
    %28 = vector.load %arg2[%c0_1, %c0_2] : memref<128x128xbf16, #tpu.memory_space<vmem>>, vector<128x128xbf16>
    %cst_3 = arith.constant dense<0.000000e+00> : vector<8x128xf32>
    %29 = tpu.matmul %27, %28, %cst_3 {dimension_numbers = #tpu.dot_dimension_numbers<[1], [0], [0], [1], [0, 0, 1, 1], [], []>} : vector<8x128xbf16>, vector<128x128xbf16>, vector<8x128xf32> -> vector<8x128xf32>
    %cst_4 = arith.constant 2.500000e-01 : f32
    %30 = vector.broadcast %cst_4 : f32 to vector<8x128xf32>
    %31 = arith.mulf %29, %30 : vector<8x128xf32>
    %32 = arith.truncf %31 : vector<8x128xf32> to vector<8x128xbf16>
    %c0_5 = arith.constant 0 : index
    %c0_6 = arith.constant 0 : index
    %33 = vector.load %arg3[%c0_5, %c0_6] : memref<128x128xbf16, #tpu.memory_space<vmem>>, vector<128x128xbf16>
    %cst_7 = arith.constant dense<0.000000e+00> : vector<8x128xf32>
    %34 = tpu.matmul %32, %33, %cst_7 {dimension_numbers = #tpu.dot_dimension_numbers<[1], [0], [0], [1], [0, 0, 1, 1], [], []>} : vector<8x128xbf16>, vector<128x128xbf16>, vector<8x128xf32> -> vector<8x128xf32>
    %c0_8 = arith.constant 0 : index
    %c0_9 = arith.constant 0 : index
    %35 = vector.load %arg4[%c0_8, %c0_9] : memref<1x128xf32, #tpu.memory_space<vmem>>, vector<1x128xf32>
    %36 = vector.broadcast %35 : vector<1x128xf32> to vector<8x128xf32>
    %37 = arith.addf %34, %36 : vector<8x128xf32>
    %cst_10 = arith.constant 0.000000e+00 : f32
    %38 = vector.broadcast %cst_10 : f32 to vector<8x128xf32>
    %39 = arith.maximumf %37, %38 : vector<8x128xf32>
    %40 = arith.truncf %39 : vector<8x128xf32> to vector<8x128xbf16>
    %c0_11 = arith.constant 0 : index
    %c0_12 = arith.constant 0 : index
    %41 = vector.load %arg5[%c0_11, %c0_12] : memref<128x128xbf16, #tpu.memory_space<vmem>>, vector<128x128xbf16>
    %cst_13 = arith.constant dense<0.000000e+00> : vector<8x128xf32>
    %42 = tpu.matmul %40, %41, %cst_13 {dimension_numbers = #tpu.dot_dimension_numbers<[1], [0], [0], [1], [0, 0, 1, 1], [], []>} : vector<8x128xbf16>, vector<128x128xbf16>, vector<8x128xf32> -> vector<8x128xf32>
    %c0_14 = arith.constant 0 : index
    %c0_15 = arith.constant 0 : index
    %43 = vector.load %arg6[%c0_14, %c0_15] : memref<1x128xf32, #tpu.memory_space<vmem>>, vector<1x128xf32>
    %44 = vector.broadcast %43 : vector<1x128xf32> to vector<8x128xf32>
    %45 = arith.addf %42, %44 : vector<8x128xf32>
    %46 = arith.mulf %45, %45 : vector<8x128xf32>
    %cst_16 = arith.constant dense<0.000000e+00> : vector<8xf32>
    %47 = vector.multi_reduction <add>, %46, %cst_16 [1] : vector<8x128xf32> to vector<8xf32>
    %48 = vector.shape_cast %47 : vector<8xf32> to vector<8x1xf32>
    %cst_17 = arith.constant 1.000000e-24 : f32
    %49 = vector.broadcast %cst_17 : f32 to vector<8x1xf32>
    %50 = arith.maximumf %48, %49 : vector<8x1xf32>
    %51 = math.rsqrt %50 : vector<8x1xf32>
    %52 = vector.broadcast %51 : vector<8x1xf32> to vector<8x128xf32>
    %53 = arith.mulf %45, %52 : vector<8x128xf32>
    %c0_18 = arith.constant 0 : index
    %c0_19 = arith.constant 0 : index
    %54 = vector.load %arg7[%c0_18, %c0_19] : memref<8x128xf32, #tpu.memory_space<vmem>>, vector<8x128xf32>
    tpu.vector_store %arg7[%c0_18, %c0_19], %53 {strides = array<i32>} : memref<8x128xf32, #tpu.memory_space<vmem>>, vector<8x128xf32>,
    return
  }
  func.func @transform_0(%arg0: i32) -> (i32, i32) {
    %c0_i32 = arith.constant 0 : i32
    %c0_i32_0 = arith.constant 0 : i32
    return %arg0, %c0_i32 : i32, i32
  }
  func.func @transform_1(%arg0: i32) -> (i32, i32) {
    %c0_i32 = arith.constant 0 : i32
    %c0_i32_0 = arith.constant 0 : i32
    %c0_i32_1 = arith.constant 0 : i32
    return %c0_i32, %c0_i32_0 : i32, i32
  }
  func.func @transform_2(%arg0: i32) -> (i32, i32) {
    %c0_i32 = arith.constant 0 : i32
    %c0_i32_0 = arith.constant 0 : i32
    %c0_i32_1 = arith.constant 0 : i32
    return %c0_i32, %c0_i32_0 : i32, i32
  }
  func.func @transform_3(%arg0: i32) -> (i32, i32) {
    %c0_i32 = arith.constant 0 : i32
    %c0_i32_0 = arith.constant 0 : i32
    %c0_i32_1 = arith.constant 0 : i32
    return %c0_i32, %c0_i32_0 : i32, i32
  }
  func.func @transform_4(%arg0: i32) -> (i32, i32) {
    %c0_i32 = arith.constant 0 : i32
    %c0_i32_0 = arith.constant 0 : i32
    %c0_i32_1 = arith.constant 0 : i32
    return %c0_i32, %c0_i32_0 : i32, i32
  }
  func.func @transform_5(%arg0: i32) -> (i32, i32) {
    %c0_i32 = arith.constant 0 : i32
    %c0_i32_0 = arith.constant 0 : i32
    %c0_i32_1 = arith.constant 0 : i32
    return %c0_i32, %c0_i32_0 : i32, i32
  }
  func.func @transform_6(%arg0: i32) -> (i32, i32) {
    %c0_i32 = arith.constant 0 : i32
    %c0_i32_0 = arith.constant 0 : i32
    return %arg0, %c0_i32 : i32, i32
  }
}

</mosaic_0001>

<llo_original>
// kernel: text_encoder_forward.1
$region0: #{text_encoder_forward.1}
  #allocation0 [shape = 'u32[]', space=smem, size = 0x4, offset = 0x4, fixed_abs, tag = 'smem constant byte address 0x4 - core index']
  #allocation1 [shape = 'u32[144,128]{1,0:T(1,128)}', space=vmem, size = 0x12000, scoped, tag = 'internal scratch']
  %s0 = inlined_call_operand.vmem [shape: s32[8,4], index: 0, kind: input, shape index: {}]
  %s1 = inlined_call_operand.hbm [shape: bf16[128,128], index: 1, kind: input, shape index: {}]
  %s2 = inlined_call_operand.hbm [shape: bf16[128,128], index: 2, kind: input, shape index: {}]
  %s3 = inlined_call_operand.vmem [shape: f32[1,128], index: 3, kind: input, shape index: {}]
  %s4 = inlined_call_operand.hbm [shape: bf16[128,128], index: 4, kind: input, shape index: {}]
  %s5 = inlined_call_operand.vmem [shape: f32[1,128], index: 5, kind: input, shape index: {}]
  %s6 = inlined_call_operand.vmem [shape: f32[8,128], index: 6, kind: output, shape index: {}]
  %s7 = sld [smem:[#allocation0]]
  $region46: #{text_encoder_forward.1} parent=0
    _
  %s9 = ssub.s32 1, %s7
  %s10 = scalar_select 0, %s9, %s7
  $region1: #{text_encoder_forward.1} parent=0
    #allocation2 [shape = 'u8[32768]{0}', space=vmem, size = 0x8000, scoped, tag = 'input window, operand 1, single buffered']
    #allocation3 [shape = 's32[1]{0}', space=sflag, size = 0x4, scoped, tag = 'scoped memory for text_encoder_forward.1']
    #allocation4 [shape = 'u8[32768]{0}', space=vmem, size = 0x8000, scoped, tag = 'input window, operand 2, single buffered']
    #allocation5 [shape = 's32[1]{0}', space=sflag, size = 0x4, scoped, tag = 'scoped memory for text_encoder_forward.1']
    #allocation6 [shape = 'u8[32768]{0}', space=vmem, size = 0x8000, scoped, tag = 'input window, operand 4, single buffered']
    %11 = vsyncpa [#allocation3], 0
    %12 = vsyncpa [#allocation5], 0
    // Predicated region
    $region2: #{text_encoder_forward.1} parent=1 // pred_check
      _
    $region3: #{text_encoder_forward.1} parent=1 // pred_check_branch
      %14 = sbr.rel (0) target = $region5
    $region4: #{text_encoder_forward.1} parent=1 // pred_region
      _
    $region5: #{text_encoder_forward.1} parent=1 // pred_fallthru
      _
    // Predicated region
    $region6: #{text_encoder_forward.1} parent=1 // pred_check
      _
    $region7: #{text_encoder_forward.1} parent=1 // pred_check_branch
      %16 = sbr.rel (0) target = $region9
    $region8: #{text_encoder_forward.1} parent=1 // pred_region
      %s18 = ssub.s32 1024, 1024
      %19 = vsyncadd [#allocation3], %s18
      %s20 = sshll.u32 [#allocation2], 4
      %s21 = int_to_ptr.vmem [resolvable:$true] %s20
      %26 = dma.hbm_to_vmem [thread:$0]  %s1, 1024, %s21, [#allocation3], 64, 64, 4
    $region9: #{text_encoder_forward.1} parent=1 // pred_fallthru
      _
    // Predicated region
    $region10: #{text_encoder_forward.1} parent=1 // pred_check
      _
    $region11: #{text_encoder_forward.1} parent=1 // pred_check_branch
      %28 = sbr.rel (0) target = $region13
    $region12: #{text_encoder_forward.1} parent=1 // pred_region
      %s30 = ssub.s32 1024, 1024
      %31 = vsyncadd [#allocation5], %s30
      %s32 = sshll.u32 [#allocation4], 4
      %s33 = int_to_ptr.vmem [resolvable:$true] %s32
      %38 = dma.hbm_to_vmem [thread:$0]  %s2, 1024, %s33, [#allocation5], 64, 64, 4
    $region13: #{text_encoder_forward.1} parent=1 // pred_fallthru
      _
    // Predicated region
    $region14: #{text_encoder_forward.1} parent=1 // pred_check
      _
    $region15: #{text_encoder_forward.1} parent=1 // pred_check_branch
      %40 = sbr.rel (0) target = $region17
    $region16: #{text_encoder_forward.1} parent=1 // pred_region
      _
    $region17: #{text_encoder_forward.1} parent=1 // pred_fallthru
      _
    // Predicated region
    $region18: #{text_encoder_forward.1} parent=1 // pred_check
      _
    $region19: #{text_encoder_forward.1} parent=1 // pred_check_branch
      %42 = sbr.rel (0) target = $region21
    $region20: #{text_encoder_forward.1} parent=1 // pred_region
      %s44 = ssub.s32 1024, 1024
      %45 = vsyncadd [#allocation5], %s44
      %s46 = sshll.u32 [#allocation6], 4
      %s47 = int_to_ptr.vmem [resolvable:$true] %s46
      %52 = dma.hbm_to_vmem [thread:$0]  %s4, 1024, %s47, [#allocation5], 64, 64, 4
    $region21: #{text_encoder_forward.1} parent=1 // pred_fallthru
      _
    // Predicated region
    $region22: #{text_encoder_forward.1} parent=1 // pred_check
      _
    $region23: #{text_encoder_forward.1} parent=1 // pred_check_branch
      %54 = sbr.rel (0) target = $region25
    $region24: #{text_encoder_forward.1} parent=1 // pred_region
      _
    $region25: #{text_encoder_forward.1} parent=1 // pred_fallthru
      _
    // Predicated region
    $region26: #{text_encoder_forward.1} parent=1 // pred_check
      _
    $region27: #{text_encoder_forward.1} parent=1 // pred_check_branch
      %56 = sbr.rel (0) target = $region29
    $region28: #{text_encoder_forward.1} parent=1 // pred_region
      %57 = dma.done [#allocation3], 1024
    $region29: #{text_encoder_forward.1} parent=1 // pred_fallthru
      _
    // Predicated region
    $region30: #{text_encoder_forward.1} parent=1 // pred_check
      _
    $region31: #{text_encoder_forward.1} parent=1 // pred_check_branch
      %59 = sbr.rel (0) target = $region33
    $region32: #{text_encoder_forward.1} parent=1 // pred_region
      %60 = dma.done [#allocation5], 1024
    $region33: #{text_encoder_forward.1} parent=1 // pred_fallthru
      _
    // Predicated region
    $region34: #{text_encoder_forward.1} parent=1 // pred_check
      _
    $region35: #{text_encoder_forward.1} parent=1 // pred_check_branch
      %62 = sbr.rel (0) target = $region37
    $region36: #{text_encoder_forward.1} parent=1 // pred_region
      %63 = dma.done [#allocation5], 1024
    $region37: #{text_encoder_forward.1} parent=1 // pred_fallthru
      _
    %v65 = vld [vmem:[%s0] sm:$0xff]
    %v66 = vlaneseq
    %v67 = vand.u32 %v66, 127
    %68 = vset.pattern.permute.xlu0 0
    %69 = vperm.xlu0 %68, %v65
    %v70 = vpop.permute.xlu0 %69
    %vm71 = vcmp.eq.s32.totalorder %v67, %v70
    %v72 = vsel %vm71, 1, 0
    %v73 = vcvt.s32.f32 %v72
    %v74 = vadd.f32 %v73, 0.0
    %75 = vset.pattern.permute.xlu0 1
    %76 = vperm.xlu0 %75, %v65
    %v77 = vpop.permute.xlu0 %76
    %vm78 = vcmp.eq.s32.totalorder %v67, %v77
    %v79 = vsel %vm78, 1, 0
    %v80 = vcvt.s32.f32 %v79
    %v81 = vadd.f32 %v74, %v80
    %82 = vset.pattern.permute.xlu0 2
    %83 = vperm.xlu0 %82, %v65
    %v84 = vpop.permute.xlu0 %83
    %vm85 = vcmp.eq.s32.totalorder %v67, %v84
    %v86 = vsel %vm85, 1, 0
    %v87 = vcvt.s32.f32 %v86
    %v88 = vadd.f32 %v81, %v87
    %89 = vset.pattern.permute.xlu0 3
    %90 = vperm.xlu0 %89, %v65
    %v91 = vpop.permute.xlu0 %90
    %vm92 = vcmp.eq.s32.totalorder %v67, %v91
    %v93 = vsel %vm92, 1, 0
    %v94 = vcvt.s32.f32 %v93
    %v95 = vadd.f32 %v88, %v94
    %v96 = vpack.c.bf16 %v95, %v95
    %v97 = vld [vmem:[#allocation2] sm:$0xf]
    %v98 = vld [vmem:[#allocation2 + $0x4] sm:$0xf]
    %v99 = vld [vmem:[#allocation2 + $0x8] sm:$0xf]
    %v100 = vld [vmem:[#allocation2 + $0xc] sm:$0xf]
    %v101 = vld [vmem:[#allocation2 + $0x10] sm:$0xf]
    %v102 = vld [vmem:[#allocation2 + $0x14] sm:$0xf]
    %v103 = vld [vmem:[#allocation2 + $0x18] sm:$0xf]
    %v104 = vld [vmem:[#allocation2 + $0x1c] sm:$0xf]
    %v105 = vld [vmem:[#allocation2 + $0x20] sm:$0xf]
    %v106 = vld [vmem:[#allocation2 + $0x24] sm:$0xf]
    %v107 = vld [vmem:[#allocation2 + $0x28] sm:$0xf]
    %v108 = vld [vmem:[#allocation2 + $0x2c] sm:$0xf]
    %v109 = vld [vmem:[#allocation2 + $0x30] sm:$0xf]
    %v110 = vld [vmem:[#allocation2 + $0x34] sm:$0xf]
    %v111 = vld [vmem:[#allocation2 + $0x38] sm:$0xf]
    %v112 = vld [vmem:[#allocation2 + $0x3c] sm:$0xf]
    %v129 = vunpack.c.l.b16 %v97
    %v130 = vunpack.c.l.b16 %v98
    %v131 = vunpack.c.l.b16 %v99
    %v132 = vunpack.c.l.b16 %v100
    %v133 = vunpack.c.l.b16 %v101
    %v134 = vunpack.c.l.b16 %v102
    %v135 = vunpack.c.l.b16 %v103
    %v136 = vunpack.c.l.b16 %v104
    %v137 = vunpack.c.l.b16 %v105
    %v138 = vunpack.c.l.b16 %v106
    %v139 = vunpack.c.l.b16 %v107
    %v140 = vunpack.c.l.b16 %v108
    %v141 = vunpack.c.l.b16 %v109
    %v142 = vunpack.c.l.b16 %v110
    %v143 = vunpack.c.l.b16 %v111
    %v144 = vunpack.c.l.b16 %v112
    %v145 = vpack.c.b16 %v130, %v129
    %v146 = vpack.c.b16 %v132, %v131
    %v147 = vpack.c.b16 %v134, %v133
    %v148 = vpack.c.b16 %v136, %v135
    %v149 = vpack.c.b16 %v138, %v137
    %v150 = vpack.c.b16 %v140, %v139
    %v151 = vpack.c.b16 %v142, %v141
    %v152 = vpack.c.b16 %v144, %v143
    %161 = vmatprep.subr.bf16.mxu0 0
    %162 = vmatpush1.bf16.msra.mxu0 %v145
    %163 = vmatprep.subr.bf16.mxu0 0
    %164 = vmatpush1.bf16.msra.mxu0 %v146
    %165 = vmatprep.subr.bf16.mxu0 0
    %166 = vmatpush1.bf16.msra.mxu0 %v147
    %167 = vmatprep.subr.bf16.mxu0 0
    %168 = vmatpush1.bf16.msra.mxu0 %v148
    %169 = vmatprep.subr.bf16.mxu0 0
    %170 = vmatpush1.bf16.msra.mxu0 %v149
    %171 = vmatprep.subr.bf16.mxu0 0
    %172 = vmatpush1.bf16.msra.mxu0 %v150
    %173 = vmatprep.subr.bf16.mxu0 0
    %174 = vmatpush1.bf16.msra.mxu0 %v151
    %175 = vmatprep.subr.bf16.mxu0 0
    %176 = vmatpush1.bf16.msra.mxu0 %v152
    %177 = vmatprep.subr.bf16.mxu0 0
    %178 = vmatpush1.bf16.msra.mxu0 0
    %179 = vmatprep.subr.bf16.mxu0 0
    %180 = vmatpush1.bf16.msra.mxu0 0
    %181 = vmatprep.subr.bf16.mxu0 0
    %182 = vmatpush1.bf16.msra.mxu0 0
    %183 = vmatprep.subr.bf16.mxu0 0
    %184 = vmatpush1.bf16.msra.mxu0 0
    %185 = vmatprep.subr.bf16.mxu0 0
    %186 = vmatpush1.bf16.msra.mxu0 0
    %187 = vmatprep.subr.bf16.mxu0 0
    %188 = vmatpush1.bf16.msra.mxu0 0
    %189 = vmatprep.subr.bf16.mxu0 0
    %190 = vmatpush1.bf16.msra.mxu0 0
    %191 = vmatprep.subr.bf16.mxu0 0
    %192 = vmatpush1.bf16.msra.mxu0 0
    %193 = vmatprep.mubr.bf16.mxu0 0
    %194 = vmatmul.mubr.bf16.gmra.mrb[0].mxu0 %v96
    %v195 = vpop.f32.mrb[0].mxu0
    %v196 = vadd.f32 0.0, %v195
    %v197 = vpop.f32.mrb[0].mxu0
    %v198 = vpop.f32.mrb[0].mxu0
    %v199 = vpop.f32.mrb[0].mxu0
    %200 = vdwg.mxu0
    %v201 = vmul.f32 %v196, 0.25
    %v202 = vpack.c.bf16 %v201, %v201
    %v203 = vld [vmem:[#allocation4] sm:$0xf]
    %v204 = vld [vmem:[#allocation4 + $0x4] sm:$0xf]
    %v205 = vld [vmem:[#allocation4 + $0x8] sm:$0xf]
    %v206 = vld [vmem:[#allocation4 + $0xc] sm:$0xf]
    %v207 = vld [vmem:[#allocation4 + $0x10] sm:$0xf]
    %v208 = vld [vmem:[#allocation4 + $0x14] sm:$0xf]
    %v209 = vld [vmem:[#allocation4 + $0x18] sm:$0xf]
    %v210 = vld [vmem:[#allocation4 + $0x1c] sm:$0xf]
    %v211 = vld [vmem:[#allocation4 + $0x20] sm:$0xf]
    %v212 = vld [vmem:[#allocation4 + $0x24] sm:$0xf]
    %v213 = vld [vmem:[#allocation4 + $0x28] sm:$0xf]
    %v214 = vld [vmem:[#allocation4 + $0x2c] sm:$0xf]
    %v215 = vld [vmem:[#allocation4 + $0x30] sm:$0xf]
    %v216 = vld [vmem:[#allocation4 + $0x34] sm:$0xf]
    %v217 = vld [vmem:[#allocation4 + $0x38] sm:$0xf]
    %v218 = vld [vmem:[#allocation4 + $0x3c] sm:$0xf]
    %v219 = vld [vmem:[%s3] sm:$0x1]
    %v221 = vlaneseq
    %v222 = vshrl.u32 %v221, 7
    %v223 = vsub.s32 0, %v222
    %v224 = vrot.slane %v219, %v223
    %v242 = vunpack.c.l.b16 %v203
    %v243 = vunpack.c.l.b16 %v204
    %v244 = vunpack.c.l.b16 %v205
    %v245 = vunpack.c.l.b16 %v206
    %v246 = vunpack.c.l.b16 %v207
    %v247 = vunpack.c.l.b16 %v208
    %v248 = vunpack.c.l.b16 %v209
    %v249 = vunpack.c.l.b16 %v210
    %v250 = vunpack.c.l.b16 %v211
    %v251 = vunpack.c.l.b16 %v212
    %v252 = vunpack.c.l.b16 %v213
    %v253 = vunpack.c.l.b16 %v214
    %v254 = vunpack.c.l.b16 %v215
    %v255 = vunpack.c.l.b16 %v216
    %v256 = vunpack.c.l.b16 %v217
    %v257 = vunpack.c.l.b16 %v218
    %v258 = vpack.c.b16 %v243, %v242
    %v259 = vpack.c.b16 %v245, %v244
    %v260 = vpack.c.b16 %v247, %v246
    %v261 = vpack.c.b16 %v249, %v248
    %v262 = vpack.c.b16 %v251, %v250
    %v263 = vpack.c.b16 %v253, %v252
    %v264 = vpack.c.b16 %v255, %v254
    %v265 = vpack.c.b16 %v257, %v256
    %274 = vmatprep.subr.bf16.mxu0 0
    %275 = vmatpush1.bf16.msra.mxu0 %v258
    %276 = vmatprep.subr.bf16.mxu0 0
    %277 = vmatpush1.bf16.msra.mxu0 %v259
    %278 = vmatprep.subr.bf16.mxu0 0
    %279 = vmatpush1.bf16.msra.mxu0 %v260
    %280 = vmatprep.subr.bf16.mxu0 0
    %281 = vmatpush1.bf16.msra.mxu0 %v261
    %282 = vmatprep.subr.bf16.mxu0 0
    %283 = vmatpush1.bf16.msra.mxu0 %v262
    %284 = vmatprep.subr.bf16.mxu0 0
    %285 = vmatpush1.bf16.msra.mxu0 %v263
    %286 = vmatprep.subr.bf16.mxu0 0
    %287 = vmatpush1.bf16.msra.mxu0 %v264
    %288 = vmatprep.subr.bf16.mxu0 0
    %289 = vmatpush1.bf16.msra.mxu0 %v265
    %290 = vmatprep.subr.bf16.mxu0 0
    %291 = vmatpush1.bf16.msra.mxu0 0
    %292 = vmatprep.subr.bf16.mxu0 0
    %293 = vmatpush1.bf16.msra.mxu0 0
    %294 = vmatprep.subr.bf16.mxu0 0
    %295 = vmatpush1.bf16.msra.mxu0 0
    %296 = vmatprep.subr.bf16.mxu0 0
    %297 = vmatpush1.bf16.msra.mxu0 0
    %298 = vmatprep.subr.bf16.mxu0 0
    %299 = vmatpush1.bf16.msra.mxu0 0
    %300 = vmatprep.subr.bf16.mxu0 0
    %301 = vmatpush1.bf16.msra.mxu0 0
    %302 = vmatprep.subr.bf16.mxu0 0
    %303 = vmatpush1.bf16.msra.mxu0 0
    %304 = vmatprep.subr.bf16.mxu0 0
    %305 = vmatpush1.bf16.msra.mxu0 0
    %306 = vmatprep.mubr.bf16.mxu0 0
    %307 = vmatmul.mubr.bf16.gmra.mrb[0].mxu0 %v202
    %v308 = vpop.f32.mrb[0].mxu0
    %v309 = vadd.f32 %v224, %v308
    %v310 = vpop.f32.mrb[0].mxu0
    %v311 = vpop.f32.mrb[0].mxu0
    %v312 = vpop.f32.mrb[0].mxu0
    %313 = vdwg.mxu0
    %v314 = vmax.f32 %v309, 0.0
    %v315 = vpack.c.bf16 %v314, %v314
    %v316 = vld [vmem:[#allocation6] sm:$0xf]
    %v317 = vld [vmem:[#allocation6 + $0x4] sm:$0xf]
    %v318 = vld [vmem:[#allocation6 + $0x8] sm:$0xf]
    %v319 = vld [vmem:[#allocation6 + $0xc] sm:$0xf]
    %v320 = vld [vmem:[#allocation6 + $0x10] sm:$0xf]
    %v321 = vld [vmem:[#allocation6 + $0x14] sm:$0xf]
    %v322 = vld [vmem:[#allocation6 + $0x18] sm:$0xf]
    %v323 = vld [vmem:[#allocation6 + $0x1c] sm:$0xf]
    %v324 = vld [vmem:[#allocation6 + $0x20] sm:$0xf]
    %v325 = vld [vmem:[#allocation6 + $0x24] sm:$0xf]
    %v326 = vld [vmem:[#allocation6 + $0x28] sm:$0xf]
    %v327 = vld [vmem:[#allocation6 + $0x2c] sm:$0xf]
    %v328 = vld [vmem:[#allocation6 + $0x30] sm:$0xf]
    %v329 = vld [vmem:[#allocation6 + $0x34] sm:$0xf]
    %v330 = vld [vmem:[#allocation6 + $0x38] sm:$0xf]
    %v331 = vld [vmem:[#allocation6 + $0x3c] sm:$0xf]
    %v332 = vld [vmem:[%s5] sm:$0x1]
    %v334 = vlaneseq
    %v335 = vshrl.u32 %v334, 7
    %v336 = vsub.s32 0, %v335
    %v337 = vrot.slane %v332, %v336
    %v355 = vunpack.c.l.b16 %v316
    %v356 = vunpack.c.l.b16 %v317
    %v357 = vunpack.c.l.b16 %v318
    %v358 = vunpack.c.l.b16 %v319
    %v359 = vunpack.c.l.b16 %v320
    %v360 = vunpack.c.l.b16 %v321
    %v361 = vunpack.c.l.b16 %v322
    %v362 = vunpack.c.l.b16 %v323
    %v363 = vunpack.c.l.b16 %v324
    %v364 = vunpack.c.l.b16 %v325
    %v365 = vunpack.c.l.b16 %v326
    %v366 = vunpack.c.l.b16 %v327
    %v367 = vunpack.c.l.b16 %v328
    %v368 = vunpack.c.l.b16 %v329
    %v369 = vunpack.c.l.b16 %v330
    %v370 = vunpack.c.l.b16 %v331
    %v371 = vpack.c.b16 %v356, %v355
    %v372 = vpack.c.b16 %v358, %v357
    %v373 = vpack.c.b16 %v360, %v359
    %v374 = vpack.c.b16 %v362, %v361
    %v375 = vpack.c.b16 %v364, %v363
    %v376 = vpack.c.b16 %v366, %v365
    %v377 = vpack.c.b16 %v368, %v367
    %v378 = vpack.c.b16 %v370, %v369
    %387 = vmatprep.subr.bf16.mxu0 0
    %388 = vmatpush1.bf16.msra.mxu0 %v371
    %389 = vmatprep.subr.bf16.mxu0 0
    %390 = vmatpush1.bf16.msra.mxu0 %v372
    %391 = vmatprep.subr.bf16.mxu0 0
    %392 = vmatpush1.bf16.msra.mxu0 %v373
    %393 = vmatprep.subr.bf16.mxu0 0
    %394 = vmatpush1.bf16.msra.mxu0 %v374
    %395 = vmatprep.subr.bf16.mxu0 0
    %396 = vmatpush1.bf16.msra.mxu0 %v375
    %397 = vmatprep.subr.bf16.mxu0 0
    %398 = vmatpush1.bf16.msra.mxu0 %v376
    %399 = vmatprep.subr.bf16.mxu0 0
    %400 = vmatpush1.bf16.msra.mxu0 %v377
    %401 = vmatprep.subr.bf16.mxu0 0
    %402 = vmatpush1.bf16.msra.mxu0 %v378
    %403 = vmatprep.subr.bf16.mxu0 0
    %404 = vmatpush1.bf16.msra.mxu0 0
    %405 = vmatprep.subr.bf16.mxu0 0
    %406 = vmatpush1.bf16.msra.mxu0 0
    %407 = vmatprep.subr.bf16.mxu0 0
    %408 = vmatpush1.bf16.msra.mxu0 0
    %409 = vmatprep.subr.bf16.mxu0 0
    %410 = vmatpush1.bf16.msra.mxu0 0
    %411 = vmatprep.subr.bf16.mxu0 0
    %412 = vmatpush1.bf16.msra.mxu0 0
    %413 = vmatprep.subr.bf16.mxu0 0
    %414 = vmatpush1.bf16.msra.mxu0 0
    %415 = vmatprep.subr.bf16.mxu0 0
    %416 = vmatpush1.bf16.msra.mxu0 0
    %417 = vmatprep.subr.bf16.mxu0 0
    %418 = vmatpush1.bf16.msra.mxu0 0
    %419 = vmatprep.mubr.bf16.mxu0 0
    %420 = vmatmul.mubr.bf16.gmra.mrb[0].mxu0 %v315
    %v421 = vpop.f32.mrb[0].mxu0
    %v422 = vadd.f32 %v337, %v421
    %v423 = vpop.f32.mrb[0].mxu0
    %v424 = vpop.f32.mrb[0].mxu0
    %v425 = vpop.f32.mrb[0].mxu0
    %426 = vdwg.mxu0
    %v427 = vmul.f32 %v422, %v422
    %428 = vadd.xlane.f32.xlu0 %v427
    %v429 = vpop.xlane.xlu0 %428
    %v430 = vmax.f32 %v429, 1e-24
    %v431 = vrsqrt.pop %v430
    %v432 = vmul.f32 %v422, %v431
    %433 = vst [vmem:[%s6] sm:$0xff] %v432
    // Predicated region
    $region38: #{text_encoder_forward.1} parent=1 // pred_check
      _
    $region39: #{text_encoder_forward.1} parent=1 // pred_check_branch
      %435 = sbr.rel (0) target = $region41
    $region40: #{text_encoder_forward.1} parent=1 // pred_region
      _
    $region41: #{text_encoder_forward.1} parent=1 // pred_fallthru
      _
    // Predicated region
    $region42: #{text_encoder_forward.1} parent=1 // pred_check
      _
    $region43: #{text_encoder_forward.1} parent=1 // pred_check_branch
      %437 = sbr.rel (0) target = $region45
    $region44: #{text_encoder_forward.1} parent=1 // pred_region
      _
    $region45: #{text_encoder_forward.1} parent=1 // pred_fallthru
      _
    %438 = vsyncpa [#allocation3], 1
    %439 = vsyncpa [#allocation5], 1

</llo_original>
